<compile_context>
chip_gen: v5e
topology: v5e:2x2
jax: 0.10.0
libtpu: 0.0.40
codegen_flags: <defaults>
</compile_context>

<pallas_src>
import functools

import jax
import jax.numpy as jnp
from jax.experimental import pallas as pl
from jax.experimental.pallas import tpu as pltpu


def _round_up(x, m):
    return (x + m - 1) // m * m


# ----------------------------------------------------------------------------
# Kernel
# ----------------------------------------------------------------------------
def _policy_act_kernel(x_ref, w_ref, b_ref, out_ref, *, obs_pad, width):
    """Fused MLPBase(actor+critic) + critic_linear + DiagGaussian mean + const logp.

    x_ref:   [TILE_B, obs_pad]                 (bf16 or f32)
    w_ref:   [obs_pad + 2*width, width] slab:  rows [0, obs_pad)          -> fused layer 1
                                               rows [obs_pad, +width)     -> block-diag layer 2
                                               rows [obs_pad+width, +width) -> fused head
    b_ref:   [8, width] f32: row0 = layer-1 bias, row1 = layer-2 bias,
                             row2 = [bm | bv | logp_const | 0...]
    out_ref: [TILE_B, width] f32 slab: lanes [0,A)=action, A=value, A+1=logp.
    """
    wdt = w_ref.dtype
    x = x_ref[...]

    # Layer 1: actor | critic fused along the lane axis.
    h = jnp.dot(x, w_ref[0:obs_pad, :], preferred_element_type=jnp.float32)
    h = jnp.tanh(h + b_ref[0:1, :])

    # Layer 2: block-diagonal (actor block, critic block).
    h = jnp.dot(h.astype(wdt), w_ref[obs_pad:obs_pad + width, :],
                preferred_element_type=jnp.float32)
    h = jnp.tanh(h + b_ref[1:2, :])

    # Fused head: one matmul + one unmasked 128-lane store.
    # Lane A+1 of the matmul is exactly 0 (zero weight column); adding the bias
    # row injects the precomputed constant log-prob.
    out_ref[...] = (
        jnp.dot(h.astype(wdt), w_ref[obs_pad + width:obs_pad + 2 * width, :],
                preferred_element_type=jnp.float32)
        + b_ref[2:3, :]
    )


# ----------------------------------------------------------------------------
# Host-side packing (done ONCE, outside the per-step hot path)
# ----------------------------------------------------------------------------
def pack_policy_params(params, matmul_dtype=jnp.bfloat16):
    """Pack the 13 Policy parameters into one weight slab and one bias slab.

    NOTE: weights must be [in, out] (i.e. torch nn.Linear.weight transposed);
    passing [out, in] silently gives wrong results.
    """
    obs_dim, H = params["w1a"].shape
    A = params["wm"].shape[1]

    W = max(_round_up(2 * H, 128), _round_up(A + 2, 128))   # lane width of the fused chain
    obs_pad = _round_up(obs_dim, 16)                        # sublane-aligned for f32 & bf16

    # Layer 1: [obs_pad, W] = [ w1a | w1c | 0 ]
    w1 = jnp.zeros((obs_pad, W), jnp.float32)
    w1 = w1.at[:obs_dim, :H].set(params["w1a"])
    w1 = w1.at[:obs_dim, H:2 * H].set(params["w1c"])

    # Layer 2: [W, W] block diagonal.
    w2 = jnp.zeros((W, W), jnp.float32)
    w2 = w2.at[:H, :H].set(params["w2a"])
    w2 = w2.at[H:2 * H, H:2 * H].set(params["w2c"])

    # Head: rows 0..H-1 carry the DiagGaussian mean, rows H..2H-1 carry the value head.
    wh = jnp.zeros((W, W), jnp.float32)
    wh = wh.at[:H, :A].set(params["wm"])
    wh = wh.at[H:2 * H, A:A + 1].set(params["wv"])

    w_slab = jnp.concatenate([w1, w2, wh], axis=0).astype(matmul_dtype)

    # Deterministic-path log-prob constant: action == mean => squared term is 0.
    logp_const = -(jnp.sum(params["logstd"]) + 0.5 * A * jnp.log(2.0 * jnp.pi))

    b_slab = jnp.zeros((8, W), jnp.float32)
    b_slab = b_slab.at[0, :H].set(params["b1a"][0])
    b_slab = b_slab.at[0, H:2 * H].set(params["b1c"][0])
    b_slab = b_slab.at[1, :H].set(params["b2a"][0])
    b_slab = b_slab.at[1, H:2 * H].set(params["b2c"][0])
    b_slab = b_slab.at[2, :A].set(params["bm"][0])
    b_slab = b_slab.at[2, A].set(params["bv"][0, 0])
    b_slab = b_slab.at[2, A + 1].set(logp_const)

    return w_slab, b_slab


# ----------------------------------------------------------------------------
# Wrapper
# ----------------------------------------------------------------------------
def policy_act_packed(x, w_slab, b_slab, *, num_actions, max_tile_b=512):
    """Policy.act(x, deterministic=True) with pre-packed parameter slabs.

    Returns (value [B,1], action [B,A], action_log_probs [B,1]), all float32.
    """
    assert x.ndim == 2
    B, obs_dim = x.shape
    W = w_slab.shape[1]
    obs_pad = w_slab.shape[0] - 2 * W
    assert obs_dim <= obs_pad

    # Batch tiling: multiple of 16 (bf16 sublane pack), <= max_tile_b.
    tile_b = min(max_tile_b, _round_up(B, 16))
    b_pad = _round_up(B, tile_b)
    n_tiles = b_pad // tile_b

    # Pad batch / feature dims and cast matmul operands to the slab dtype.
    x_p = jnp.zeros((b_pad, obs_pad), w_slab.dtype).at[:B, :obs_dim].set(
        x.astype(w_slab.dtype))

    out = pl.pallas_call(
        functools.partial(_policy_act_kernel, obs_pad=obs_pad, width=W),
        out_shape=jax.ShapeDtypeStruct((b_pad, W), jnp.float32),
        grid=(n_tiles,),
        in_specs=[
            pl.BlockSpec((tile_b, obs_pad), lambda i: (i, 0)),           # x tile
            pl.BlockSpec((obs_pad + 2 * W, W), lambda i: (0, 0)),        # weights (resident)
            pl.BlockSpec((8, W), lambda i: (0, 0)),                      # biases  (resident)
        ],
        out_specs=pl.BlockSpec((tile_b, W), lambda i: (i, 0)),
        compiler_params=pltpu.CompilerParams(
            dimension_semantics=("parallel",)),                          # v7x: 2 TCs
    )(x_p, w_slab, b_slab)

    A = num_actions
    action = out[:B, :A]
    value = out[:B, A:A + 1]
    logp = out[:B, A + 1:A + 2]
    return value, action, logp


# ----------------------------------------------------------------------------
# Pure-JAX reference (mirrors the PyTorch module's act(deterministic=True))
# ----------------------------------------------------------------------------
def policy_act_ref(x, params, matmul_dtype=jnp.float32):
    def dot(a, b):
        return jnp.dot(a.astype(matmul_dtype), b.astype(matmul_dtype),
                       preferred_element_type=jnp.float32)

    hc = jnp.tanh(dot(x, params["w1c"]) + params["b1c"])
    hc = jnp.tanh(dot(hc, params["w2c"]) + params["b2c"])
    value = dot(hc, params["wv"]) + params["bv"]

    ha = jnp.tanh(dot(x, params["w1a"]) + params["b1a"])
    ha = jnp.tanh(dot(ha, params["w2a"]) + params["b2a"])
    mean = dot(ha, params["wm"]) + params["bm"]

    logstd = jnp.broadcast_to(params["logstd"], mean.shape)
    std = jnp.exp(logstd)
    action = mean  # deterministic=True -> dist.mode()
    logp = jnp.sum(
        -((action - mean) ** 2) / (2.0 * std * std)
        - logstd - 0.5 * jnp.log(2.0 * jnp.pi),
        axis=-1, keepdims=True)
    return value, action, logp


# ----------------------------------------------------------------------------
# Parameter init matching the PyTorch module (__init__):
#   MLPBase linears: orthogonal(gain=sqrt(2)), zero bias
#   DiagGaussian mean: orthogonal(gain=1), zero bias; logstd bias = 0
# Weights stored as [in, out] (transposed vs torch.nn.Linear.weight).
# ----------------------------------------------------------------------------
def make_params(key, obs_dim, hidden_size, num_actions):
    ks = jax.random.split(key, 6)
    orth = jax.nn.initializers.orthogonal
    g = jnp.sqrt(2.0)
    return {
        "w1a": orth(g)(ks[0], (obs_dim, hidden_size), jnp.float32),
        "b1a": jnp.zeros((1, hidden_size), jnp.float32),
        "w2a": orth(g)(ks[1], (hidden_size, hidden_size), jnp.float32),
        "b2a": jnp.zeros((1, hidden_size), jnp.float32),
        "w1c": orth(g)(ks[2], (obs_dim, hidden_size), jnp.float32),
        "b1c": jnp.zeros((1, hidden_size), jnp.float32),
        "w2c": orth(g)(ks[3], (hidden_size, hidden_size), jnp.float32),
        "b2c": jnp.zeros((1, hidden_size), jnp.float32),
        "wv":  orth(1.0)(ks[4], (hidden_size, 1), jnp.float32),
        "bv":  jnp.zeros((1, 1), jnp.float32),
        "wm":  orth(1.0)(ks[5], (hidden_size, num_actions), jnp.float32),
        "bm":  jnp.zeros((1, num_actions), jnp.float32),
        "logstd": jnp.zeros((1, num_actions), jnp.float32),
    }


if __name__ == "__main__":
    key = jax.random.PRNGKey(0)

    B = 8          # batch
    OBS = 32       # obs_shape[0] (encoder output / feature dim)
    HIDDEN = 64    # MLPBase hidden_size
    ACT = 4        # action_space.shape[0]

    params = make_params(key, OBS, HIDDEN, ACT)
    x = jax.random.normal(jax.random.fold_in(key, 1), (B, OBS), jnp.float32)

    # Pack parameters once (bf16 MXU operands; f32 accumulation + biases).
    w_slab, b_slab = pack_policy_params(params, matmul_dtype=jnp.bfloat16)

    act_fn = jax.jit(functools.partial(policy_act_packed, num_actions=ACT))
    value, action, action_log_probs = jax.block_until_ready(
        act_fn(x, w_slab, b_slab))

    assert value.shape == (B, 1)
    assert action.shape == (B, ACT)
    assert action_log_probs.shape == (B, 1)
    assert jnp.all(jnp.isfinite(value))
    assert jnp.all(jnp.isfinite(action))
    assert jnp.all(jnp.isfinite(action_log_probs))

    # Same-precision reference (bf16 matmul operands, f32 accumulation): tight.
    v_r, a_r, lp_r = policy_act_ref(x, params, matmul_dtype=jnp.bfloat16)
    assert jnp.allclose(value, v_r, atol=1e-2, rtol=1e-2)
    assert jnp.allclose(action, a_r, atol=1e-2, rtol=1e-2)
    assert jnp.allclose(action_log_probs, lp_r, atol=1e-2, rtol=1e-2)

    # Full-f32 reference: loose tolerance (bf16 MXU inputs).
    v_f, a_f, lp_f = policy_act_ref(x, params, matmul_dtype=jnp.float32)
    assert jnp.allclose(value, v_f, atol=1e-1, rtol=1e-1)
    assert jnp.allclose(action, a_f, atol=1e-1, rtol=1e-1)
    assert jnp.allclose(action_log_probs, lp_f, atol=1e-1, rtol=1e-1)

    print("KERNEL_OK")
</pallas_src>

<mosaic_0001>
module attributes {stable_mosaic.version = 11 : i64} {
  func.func @_policy_act_kernel(%arg0: i32, %arg1: memref<16x32xbf16, #tpu.memory_space<vmem>>, %arg2: memref<288x128xbf16, #tpu.memory_space<vmem>>, %arg3: memref<8x128xf32, #tpu.memory_space<vmem>>, %arg4: memref<16x128xf32, #tpu.memory_space<vmem>>) attributes {dimension_semantics = [#tpu.dimension_semantics<parallel>], iteration_bounds = array<i64: 1>, scalar_prefetch = 0 : i64, scratch_operands = 0 : i64, tpu.core_type = #tpu.core_type<tc>, window_params = [{transform_indices = @transform_0, window_bounds = array<i64: 16, 32>}, {pipeline_mode = #tpu.pipeline_mode<synchronous>, transform_indices = @transform_1, window_bounds = array<i64: 288, 128>}, {pipeline_mode = #tpu.pipeline_mode<synchronous>, transform_indices = @transform_2, window_bounds = array<i64: 8, 128>}, {transform_indices = @transform_3, window_bounds = array<i64: 16, 128>}]} {
    %c0 = arith.constant 0 : index
    %c0_0 = arith.constant 0 : index
    %0 = vector.load %arg1[%c0, %c0_0] : memref<16x32xbf16, #tpu.memory_space<vmem>>, vector<16x32xbf16>
    %c0_1 = arith.constant 0 : index
    %c0_2 = arith.constant 0 : index
    %1 = vector.load %arg2[%c0_1, %c0_2] : memref<288x128xbf16, #tpu.memory_space<vmem>>, vector<32x128xbf16>
    %cst = arith.constant dense<0.000000e+00> : vector<16x128xf32>
    %2 = tpu.matmul %0, %1, %cst {dimension_numbers = #tpu.dot_dimension_numbers<[1], [0], [0], [1], [0, 0, 1, 1], [], []>} : vector<16x32xbf16>, vector<32x128xbf16>, vector<16x128xf32> -> vector<16x128xf32>
    %c0_3 = arith.constant 0 : index
    %c0_4 = arith.constant 0 : index
    %3 = vector.load %arg3[%c0_3, %c0_4] : memref<8x128xf32, #tpu.memory_space<vmem>>, vector<1x128xf32>
    %4 = vector.broadcast %3 : vector<1x128xf32> to vector<16x128xf32>
    %5 = arith.addf %2, %4 : vector<16x128xf32>
    %6 = math.tanh %5 : vector<16x128xf32>
    %7 = arith.truncf %6 : vector<16x128xf32> to vector<16x128xbf16>
    %c32 = arith.constant 32 : index
    %c0_5 = arith.constant 0 : index
    %8 = vector.load %arg2[%c32, %c0_5] : memref<288x128xbf16, #tpu.memory_space<vmem>>, vector<128x128xbf16>
    %cst_6 = arith.constant dense<0.000000e+00> : vector<16x128xf32>
    %9 = tpu.matmul %7, %8, %cst_6 {dimension_numbers = #tpu.dot_dimension_numbers<[1], [0], [0], [1], [0, 0, 1, 1], [], []>} : vector<16x128xbf16>, vector<128x128xbf16>, vector<16x128xf32> -> vector<16x128xf32>
    %c1 = arith.constant 1 : index
    %c0_7 = arith.constant 0 : index
    %10 = vector.load %arg3[%c1, %c0_7] : memref<8x128xf32, #tpu.memory_space<vmem>>, vector<1x128xf32>
    %11 = vector.broadcast %10 : vector<1x128xf32> to vector<16x128xf32>
    %12 = arith.addf %9, %11 : vector<16x128xf32>
    %13 = math.tanh %12 : vector<16x128xf32>
    %14 = arith.truncf %13 : vector<16x128xf32> to vector<16x128xbf16>
    %c160 = arith.constant 160 : index
    %c0_8 = arith.constant 0 : index
    %15 = vector.load %arg2[%c160, %c0_8] : memref<288x128xbf16, #tpu.memory_space<vmem>>, vector<128x128xbf16>
    %cst_9 = arith.constant dense<0.000000e+00> : vector<16x128xf32>
    %16 = tpu.matmul %14, %15, %cst_9 {dimension_numbers = #tpu.dot_dimension_numbers<[1], [0], [0], [1], [0, 0, 1, 1], [], []>} : vector<16x128xbf16>, vector<128x128xbf16>, vector<16x128xf32> -> vector<16x128xf32>
    %c2 = arith.constant 2 : index
    %c0_10 = arith.constant 0 : index
    %17 = vector.load %arg3[%c2, %c0_10] : memref<8x128xf32, #tpu.memory_space<vmem>>, vector<1x128xf32>
    %18 = vector.broadcast %17 : vector<1x128xf32> to vector<16x128xf32>
    %19 = arith.addf %16, %18 : vector<16x128xf32>
    %c0_11 = arith.constant 0 : index
    %c0_12 = arith.constant 0 : index
    %20 = vector.load %arg4[%c0_11, %c0_12] : memref<16x128xf32, #tpu.memory_space<vmem>>, vector<16x128xf32>
    tpu.vector_store %arg4[%c0_11, %c0_12], %19 {strides = array<i32>} : memref<16x128xf32, #tpu.memory_space<vmem>>, vector<16x128xf32>,
    return
  }
  func.func @transform_0(%arg0: i32) -> (i32, i32) {
    %c0_i32 = arith.constant 0 : i32
    %c0_i32_0 = arith.constant 0 : i32
    return %arg0, %c0_i32 : i32, i32
  }
  func.func @transform_1(%arg0: i32) -> (i32, i32) {
    %c0_i32 = arith.constant 0 : i32
    %c0_i32_0 = arith.constant 0 : i32
    %c0_i32_1 = arith.constant 0 : i32
    return %c0_i32, %c0_i32_0 : i32, i32
  }
  func.func @transform_2(%arg0: i32) -> (i32, i32) {
    %c0_i32 = arith.constant 0 : i32
    %c0_i32_0 = arith.constant 0 : i32
    %c0_i32_1 = arith.constant 0 : i32
    return %c0_i32, %c0_i32_0 : i32, i32
  }
  func.func @transform_3(%arg0: i32) -> (i32, i32) {
    %c0_i32 = arith.constant 0 : i32
    %c0_i32_0 = arith.constant 0 : i32
    return %arg0, %c0_i32 : i32, i32
  }
}

</mosaic_0001>

<llo_original>
// kernel: policy_act_packed.1
$region0: #{policy_act_packed.1}
  #allocation0 [shape = 'u32[]', space=smem, size = 0x4, offset = 0x4, fixed_abs, tag = 'smem constant byte address 0x4 - core index']
  #allocation1 [shape = 'u32[72,128]{1,0:T(1,128)}', space=vmem, size = 0x9000, scoped, tag = 'internal scratch']
  %s0 = inlined_call_operand.vmem [shape: bf16[16,32], index: 0, kind: input, shape index: {}]
  %s1 = inlined_call_operand.hbm [shape: bf16[288,128], index: 1, kind: input, shape index: {}]
  %s2 = inlined_call_operand.vmem [shape: f32[8,128], index: 2, kind: input, shape index: {}]
  %s3 = inlined_call_operand.vmem [shape: f32[16,128], index: 3, kind: output, shape index: {}]
  %s4 = sld [smem:[#allocation0]]
  $region26: #{policy_act_packed.1} parent=0
    _
  %s6 = ssub.s32 1, %s4
  %s7 = scalar_select 0, %s6, %s4
  $region1: #{policy_act_packed.1} parent=0
    #allocation2 [shape = 'u8[73728]{0}', space=vmem, size = 0x12000, scoped, tag = 'input window, operand 1, single buffered']
    #allocation3 [shape = 's32[1]{0}', space=sflag, size = 0x4, scoped, tag = 'scoped memory for policy_act_packed.1']
    %8 = vsyncpa [#allocation3], 0
    // Predicated region
    $region2: #{policy_act_packed.1} parent=1 // pred_check
      _
    $region3: #{policy_act_packed.1} parent=1 // pred_check_branch
      %10 = sbr.rel (0) target = $region5
    $region4: #{policy_act_packed.1} parent=1 // pred_region
      _
    $region5: #{policy_act_packed.1} parent=1 // pred_fallthru
      _
    // Predicated region
    $region6: #{policy_act_packed.1} parent=1 // pred_check
      _
    $region7: #{policy_act_packed.1} parent=1 // pred_check_branch
      %12 = sbr.rel (0) target = $region9
    $region8: #{policy_act_packed.1} parent=1 // pred_region
      %14 = vsyncadd [#allocation3], 0
      %s15 = sshll.u32 %s1, 4
      %s16 = int_to_ptr.hbm [resolvable:$true] %s15
      %s17 = sshll.u32 [#allocation2], 4
      %s18 = int_to_ptr.vmem [resolvable:$true] %s17
      %23 = dma.hbm_to_vmem [thread:$0]  %s16, 2304, %s18, [#allocation3], 64, 64, 4
    $region9: #{policy_act_packed.1} parent=1 // pred_fallthru
      _
    // Predicated region
    $region10: #{policy_act_packed.1} parent=1 // pred_check
      _
    $region11: #{policy_act_packed.1} parent=1 // pred_check_branch
      %25 = sbr.rel (0) target = $region13
    $region12: #{policy_act_packed.1} parent=1 // pred_region
      _
    $region13: #{policy_act_packed.1} parent=1 // pred_fallthru
      _
    // Predicated region
    $region14: #{policy_act_packed.1} parent=1 // pred_check
      _
    $region15: #{policy_act_packed.1} parent=1 // pred_check_branch
      %27 = sbr.rel (0) target = $region17
    $region16: #{policy_act_packed.1} parent=1 // pred_region
      %29 = dma.done [#allocation3], 2304
    $region17: #{policy_act_packed.1} parent=1 // pred_fallthru
      _
    %v31 = vld [vmem:[%s0] sm:$0xf]
    %v32 = vld [vmem:[%s0 + $0x4] sm:$0xf]
    %v33 = vld [vmem:[#allocation2] sm:$0xf]
    %v34 = vld [vmem:[#allocation2 + $0x4] sm:$0xf]
    %v35 = vld [vmem:[#allocation2 + $0x8] sm:$0xf]
    %v36 = vld [vmem:[#allocation2 + $0xc] sm:$0xf]
    %v37 = vld [vmem:[%s2] sm:$0x1]
    %v38 = vperm.slane %v37, 0
    %v41 = vunpack.c.l.b16 %v31
    %v42 = vunpack.c.l.b16 %v32
    %v43 = vpack.c.b16 %v42, %v41
    %v48 = vunpack.c.l.b16 %v33
    %v49 = vunpack.c.l.b16 %v34
    %v50 = vunpack.c.l.b16 %v35
    %v51 = vunpack.c.l.b16 %v36
    %v52 = vpack.c.b16 %v49, %v48
    %v53 = vpack.c.b16 %v51, %v50
    %vm56 = vcmask 261120
    %v58 = vsel %vm56, %v43, 0
    %60 = vmatpush.bf16.msra.mxu0 0
    %61 = vmatpush.bf16.msra.mxu0 0
    %62 = vmatpush.bf16.msra.mxu0 0
    %63 = vmatpush.bf16.msra.mxu0 0
    %64 = vmatpush.bf16.msra.mxu0 0
    %65 = vmatpush.bf16.msra.mxu0 0
    %66 = vmatpush.bf16.msra.mxu0 %v53
    %67 = vmatpush.bf16.msra.mxu0 %v52
    %68 = vmatmul.bf16.gmra.mxu0 %v58
    %v69 = vpop.f32.mrf.mxu0
    %v70 = vadd.f32 %v38, %v69
    %v71 = vpop.f32.mrf.mxu0
    %v72 = vadd.f32 %v38, %v71
    %73 = vdwg.mxu0
    %v74 = vtanh.pop %v70
    %v75 = vtanh.pop %v72
    %v76 = vpack.c.bf16 %v75, %v74
    %v77 = vld [vmem:[#allocation2 + $0x10] sm:$0xf]
    %v78 = vld [vmem:[#allocation2 + $0x14] sm:$0xf]
    %v79 = vld [vmem:[#allocation2 + $0x18] sm:$0xf]
    %v80 = vld [vmem:[#allocation2 + $0x1c] sm:$0xf]
    %v81 = vld [vmem:[#allocation2 + $0x20] sm:$0xf]
    %v82 = vld [vmem:[#allocation2 + $0x24] sm:$0xf]
    %v83 = vld [vmem:[#allocation2 + $0x28] sm:$0xf]
    %v84 = vld [vmem:[#allocation2 + $0x2c] sm:$0xf]
    %v85 = vld [vmem:[#allocation2 + $0x30] sm:$0xf]
    %v86 = vld [vmem:[#allocation2 + $0x34] sm:$0xf]
    %v87 = vld [vmem:[#allocation2 + $0x38] sm:$0xf]
    %v88 = vld [vmem:[#allocation2 + $0x3c] sm:$0xf]
    %v89 = vld [vmem:[#allocation2 + $0x40] sm:$0xf]
    %v90 = vld [vmem:[#allocation2 + $0x44] sm:$0xf]
    %v91 = vld [vmem:[#allocation2 + $0x48] sm:$0xf]
    %v92 = vld [vmem:[#allocation2 + $0x4c] sm:$0xf]
    %v93 = vld [vmem:[%s2 + $0x1] sm:$0x1]
    %v94 = vperm.slane %v93, 0
    %v111 = vunpack.c.l.b16 %v77
    %v112 = vunpack.c.l.b16 %v78
    %v113 = vunpack.c.l.b16 %v79
    %v114 = vunpack.c.l.b16 %v80
    %v115 = vunpack.c.l.b16 %v81
    %v116 = vunpack.c.l.b16 %v82
    %v117 = vunpack.c.l.b16 %v83
    %v118 = vunpack.c.l.b16 %v84
    %v119 = vunpack.c.l.b16 %v85
    %v120 = vunpack.c.l.b16 %v86
    %v121 = vunpack.c.l.b16 %v87
    %v122 = vunpack.c.l.b16 %v88
    %v123 = vunpack.c.l.b16 %v89
    %v124 = vunpack.c.l.b16 %v90
    %v125 = vunpack.c.l.b16 %v91
    %v126 = vunpack.c.l.b16 %v92
    %v127 = vpack.c.b16 %v112, %v111
    %v128 = vpack.c.b16 %v114, %v113
    %v129 = vpack.c.b16 %v116, %v115
    %v130 = vpack.c.b16 %v118, %v117
    %v131 = vpack.c.b16 %v120, %v119
    %v132 = vpack.c.b16 %v122, %v121
    %v133 = vpack.c.b16 %v124, %v123
    %v134 = vpack.c.b16 %v126, %v125
    %143 = vmatpush.bf16.msra.mxu0 %v134
    %144 = vmatpush.bf16.msra.mxu0 %v133
    %145 = vmatpush.bf16.msra.mxu0 %v132
    %146 = vmatpush.bf16.msra.mxu0 %v131
    %147 = vmatpush.bf16.msra.mxu0 %v130
    %148 = vmatpush.bf16.msra.mxu0 %v129
    %149 = vmatpush.bf16.msra.mxu0 %v128
    %150 = vmatpush.bf16.msra.mxu0 %v127
    %151 = vmatmul.bf16.gmra.mxu0 %v76
    %v152 = vpop.f32.mrf.mxu0
    %v153 = vadd.f32 %v94, %v152
    %v154 = vpop.f32.mrf.mxu0
    %v155 = vadd.f32 %v94, %v154
    %156 = vdwg.mxu0
    %v157 = vtanh.pop %v153
    %v158 = vtanh.pop %v155
    %v159 = vpack.c.bf16 %v158, %v157
    %v160 = vld [vmem:[#allocation2 + $0x50] sm:$0xf]
    %v161 = vld [vmem:[#allocation2 + $0x54] sm:$0xf]
    %v162 = vld [vmem:[#allocation2 + $0x58] sm:$0xf]
    %v163 = vld [vmem:[#allocation2 + $0x5c] sm:$0xf]
    %v164 = vld [vmem:[#allocation2 + $0x60] sm:$0xf]
    %v165 = vld [vmem:[#allocation2 + $0x64] sm:$0xf]
    %v166 = vld [vmem:[#allocation2 + $0x68] sm:$0xf]
    %v167 = vld [vmem:[#allocation2 + $0x6c] sm:$0xf]
    %v168 = vld [vmem:[#allocation2 + $0x70] sm:$0xf]
    %v169 = vld [vmem:[#allocation2 + $0x74] sm:$0xf]
    %v170 = vld [vmem:[#allocation2 + $0x78] sm:$0xf]
    %v171 = vld [vmem:[#allocation2 + $0x7c] sm:$0xf]
    %v172 = vld [vmem:[#allocation2 + $0x80] sm:$0xf]
    %v173 = vld [vmem:[#allocation2 + $0x84] sm:$0xf]
    %v174 = vld [vmem:[#allocation2 + $0x88] sm:$0xf]
    %v175 = vld [vmem:[#allocation2 + $0x8c] sm:$0xf]
    %v176 = vld [vmem:[%s2 + $0x2] sm:$0x1]
    %v177 = vperm.slane %v176, 0
    %v194 = vunpack.c.l.b16 %v160
    %v195 = vunpack.c.l.b16 %v161
    %v196 = vunpack.c.l.b16 %v162
    %v197 = vunpack.c.l.b16 %v163
    %v198 = vunpack.c.l.b16 %v164
    %v199 = vunpack.c.l.b16 %v165
    %v200 = vunpack.c.l.b16 %v166
    %v201 = vunpack.c.l.b16 %v167
    %v202 = vunpack.c.l.b16 %v168
    %v203 = vunpack.c.l.b16 %v169
    %v204 = vunpack.c.l.b16 %v170
    %v205 = vunpack.c.l.b16 %v171
    %v206 = vunpack.c.l.b16 %v172
    %v207 = vunpack.c.l.b16 %v173
    %v208 = vunpack.c.l.b16 %v174
    %v209 = vunpack.c.l.b16 %v175
    %v210 = vpack.c.b16 %v195, %v194
    %v211 = vpack.c.b16 %v197, %v196
    %v212 = vpack.c.b16 %v199, %v198
    %v213 = vpack.c.b16 %v201, %v200
    %v214 = vpack.c.b16 %v203, %v202
    %v215 = vpack.c.b16 %v205, %v204
    %v216 = vpack.c.b16 %v207, %v206
    %v217 = vpack.c.b16 %v209, %v208
    %226 = vmatpush.bf16.msra.mxu0 %v217
    %227 = vmatpush.bf16.msra.mxu0 %v216
    %228 = vmatpush.bf16.msra.mxu0 %v215
    %229 = vmatpush.bf16.msra.mxu0 %v214
    %230 = vmatpush.bf16.msra.mxu0 %v213
    %231 = vmatpush.bf16.msra.mxu0 %v212
    %232 = vmatpush.bf16.msra.mxu0 %v211
    %233 = vmatpush.bf16.msra.mxu0 %v210
    %234 = vmatmul.bf16.gmra.mxu0 %v159
    %v235 = vpop.f32.mrf.mxu0
    %v236 = vadd.f32 %v177, %v235
    %v237 = vpop.f32.mrf.mxu0
    %v238 = vadd.f32 %v177, %v237
    %239 = vdwg.mxu0
    %240 = vst [vmem:[%s3] sm:$0xff] %v236
    %241 = vst [vmem:[%s3 + $0x8] sm:$0xff] %v238
    // Predicated region
    $region18: #{policy_act_packed.1} parent=1 // pred_check
      _
    $region19: #{policy_act_packed.1} parent=1 // pred_check_branch
      %243 = sbr.rel (0) target = $region21
    $region20: #{policy_act_packed.1} parent=1 // pred_region
      _
    $region21: #{policy_act_packed.1} parent=1 // pred_fallthru
      _
    // Predicated region
    $region22: #{policy_act_packed.1} parent=1 // pred_check
      _
    $region23: #{policy_act_packed.1} parent=1 // pred_check_branch
      %245 = sbr.rel (0) target = $region25
    $region24: #{policy_act_packed.1} parent=1 // pred_region
      _
    $region25: #{policy_act_packed.1} parent=1 // pred_fallthru
      _
    %246 = vsyncpa [#allocation3], 1

</llo_original>
